<compile_context>
chip_gen: v5e
topology: v5e:2x2
jax: 0.10.0
libtpu: 0.0.40
codegen_flags: <defaults>
</compile_context>

<pallas_src>
import functools

import jax
import jax.numpy as jnp
from jax.experimental import pallas as pl
from jax.experimental.pallas import tpu as pltpu

# lossfun hyper-parameters (from __init__); right_side=True, both_sides=False.
GAMMA = 0.25   # only used by focal_loss, which forward() does not call
MU = 1.0
SIGMA = 0.05
BASE = 1.0

_LANE = 128
_NUM_PARTS = 2   # leading "parallel" grid axis: 2 TensorCores on v7x, no-op elsewhere


def _loss_kernel(n_ref, preds_ref, labels_ref, out_ref, acc_ref, *, tm):
    part = pl.program_id(0)
    step = pl.program_id(1)
    steps = pl.num_programs(1)

    @pl.when(step == 0)
    def _init():
        acc_ref[...] = jnp.zeros_like(acc_ref)

    x = preds_ref[...]                                 # (tm, C) f32
    lbl = labels_ref[...]                              # (tm, 1) i32

    # log_softmax gathered at the label column, without materializing softmax:
    #   lp = (x[label] - m) - log(sum(exp(x - m)))  ;  p = exp(lp)
    m = jnp.max(x, axis=-1, keepdims=True)             # (tm, 1)
    xm = x - m                                         # (tm, C)
    s = jnp.sum(jnp.exp(xm), axis=-1, keepdims=True)   # (tm, 1)

    col = jax.lax.broadcasted_iota(jnp.int32, x.shape, 1)
    xm_lbl = jnp.sum(jnp.where(col == lbl, xm, 0.0), axis=-1, keepdims=True)

    lp = xm_lbl - jnp.log(s)                           # log_softmax at labels
    p = jnp.exp(lp)                                    # softmax at labels

    # gaussian_loss (right_side=True): y = base + exp(-(p - mu)^2 / (2*sigma^2))
    y = BASE + jnp.exp(-((p - MU) ** 2) * (1.0 / (2.0 * SIGMA * SIGMA)))
    loss = -(y * lp)                                   # (tm, 1)

    # zero out padded rows (global row index >= real N)
    row = (part * steps + step) * tm + jax.lax.broadcasted_iota(
        jnp.int32, loss.shape, 0)
    loss = jnp.where(row < n_ref[0], loss, 0.0)

    acc_ref[...] += loss

    @pl.when(step == steps - 1)
    def _finalize():
        total = jnp.sum(acc_ref[...])
        out_ref[...] = jnp.broadcast_to(total, out_ref.shape).astype(out_ref.dtype)


def _choose_tile(n_rows, c):
    """Largest row tile keeping double-buffered inputs within ~8 MiB of VMEM."""
    # per-row VMEM bytes (x2 buffers): preds row (c*4) + labels row padded to 128 lanes
    per_row = 2 * (c * 4 + _LANE * 4)
    tm = (8 * 1024 * 1024) // per_row
    tm = max(8, min(2048, tm))
    tm = (tm // 128) * 128 if tm >= 128 else (tm // 8) * 8
    min_cover = ((n_rows + 7) // 8) * 8      # don't over-pad tiny inputs
    return int(min(tm, min_cover))


@functools.partial(jax.jit, static_argnames=("size_average",))
def lossfun_pallas(preds, labels, size_average=True):
    """preds: (..., C) float, labels: (...) int — matches the torch forward."""
    C = preds.shape[-1]
    x = preds.reshape(-1, C).astype(jnp.float32)
    lbl = labels.reshape(-1, 1).astype(jnp.int32)
    N = x.shape[0]

    tm = _choose_tile(N, C)
    chunk = _NUM_PARTS * tm
    n_pad = ((N + chunk - 1) // chunk) * chunk
    if n_pad > N:
        x = jnp.pad(x, ((0, n_pad - N), (0, 0)))
        lbl = jnp.pad(lbl, ((0, n_pad - N), (0, 0)))
    steps = n_pad // chunk

    kernel = functools.partial(_loss_kernel, tm=tm)
    partials = pl.pallas_call(
        kernel,
        out_shape=jax.ShapeDtypeStruct((_NUM_PARTS, 8, _LANE), jnp.float32),
        grid_spec=pltpu.PrefetchScalarGridSpec(
            num_scalar_prefetch=1,
            grid=(_NUM_PARTS, steps),
            in_specs=[
                pl.BlockSpec((tm, C), lambda p, i, n: (p * steps + i, 0)),
                pl.BlockSpec((tm, 1), lambda p, i, n: (p * steps + i, 0)),
            ],
            out_specs=pl.BlockSpec((1, 8, _LANE), lambda p, i, n: (p, 0, 0)),
            scratch_shapes=[pltpu.VMEM((tm, 1), jnp.float32)],
        ),
        compiler_params=pltpu.CompilerParams(
            dimension_semantics=("parallel", "arbitrary"),
            vmem_limit_bytes=32 * 1024 * 1024,
        ),
    )(jnp.array([N], dtype=jnp.int32), x, lbl)

    loss_sum = jnp.sum(partials[:, 0, 0])
    if size_average:
        return loss_sum / jnp.float32(N)
    return loss_sum


def lossfun_ref(preds, labels, size_average=True):
    """Pure-JAX reference of the torch module's forward."""
    C = preds.shape[-1]
    x = preds.reshape(-1, C).astype(jnp.float32)
    lbl = labels.reshape(-1).astype(jnp.int32)
    logsoft = jax.nn.log_softmax(x, axis=1)
    soft = jax.nn.softmax(x, axis=1)
    p = jnp.take_along_axis(soft, lbl[:, None], axis=1)
    lp = jnp.take_along_axis(logsoft, lbl[:, None], axis=1)
    y = BASE + jnp.exp(-((p - MU) ** 2) / (2.0 * SIGMA * SIGMA))
    lv = -(y * lp)
    return jnp.mean(lv) if size_average else jnp.sum(lv)


if __name__ == "__main__":
    key = jax.random.PRNGKey(0)
    k1, k2 = jax.random.split(key)
    # small shapes: batch=2, seq=8, num_classes=32  ->  N = 16 rows
    preds = jax.random.normal(k1, (2, 8, 32), dtype=jnp.float32)
    labels = jax.random.randint(k2, (2, 8), 0, 32, dtype=jnp.int32)

    out = lossfun_pallas(preds, labels)
    jax.block_until_ready(out)

    ref = lossfun_ref(preds, labels)
    assert jnp.allclose(out, ref, rtol=1e-5, atol=1e-5), (out, ref)
    print("KERNEL_OK")
</pallas_src>

<mosaic_0001>
module attributes {stable_mosaic.version = 11 : i64} {
  func.func @_loss_kernel(%arg0: i32, %arg1: i32, %arg2: memref<1xi32, #tpu.memory_space<smem>>, %arg3: memref<16x32xf32, #tpu.memory_space<vmem>>, %arg4: memref<16x1xi32, #tpu.memory_space<vmem>>, %arg5: memref<1x8x128xf32, #tpu.memory_space<vmem>>, %arg6: memref<16x1xf32, #tpu.memory_space<vmem>>) attributes {dimension_semantics = [#tpu.dimension_semantics<parallel>, #tpu.dimension_semantics<arbitrary>], iteration_bounds = array<i64: 2, 1>, scalar_prefetch = 1 : i64, scratch_operands = 1 : i64, tpu.core_type = #tpu.core_type<tc>, window_params = [{transform_indices = @transform_0, window_bounds = array<i64: 16, 32>}, {transform_indices = @transform_1, window_bounds = array<i64: 16, 1>}, {transform_indices = @transform_2, window_bounds = array<i64: 1, 8, 128>}]} {
    %c0_i32 = arith.constant 0 : i32
    %0 = arith.cmpi eq, %arg1, %c0_i32 : i32
    %1 = arith.extui %0 : i1 to i32
    %c0_i32_0 = arith.constant 0 : i32
    %2 = arith.cmpi ne, %1, %c0_i32_0 : i32
    scf.if %2 {
      %cst_20 = arith.constant 0.000000e+00 : f32
      %52 = vector.broadcast %cst_20 : f32 to vector<16x1xf32>
      %c0_21 = arith.constant 0 : index
      %c0_22 = arith.constant 0 : index
      %53 = vector.load %arg6[%c0_21, %c0_22] : memref<16x1xf32, #tpu.memory_space<vmem>>, vector<16x1xf32>
      tpu.vector_store %arg6[%c0_21, %c0_22], %52 {strides = array<i32>} : memref<16x1xf32, #tpu.memory_space<vmem>>, vector<16x1xf32>,
    } else {
    }
    %c0 = arith.constant 0 : index
    %c0_1 = arith.constant 0 : index
    %3 = vector.load %arg3[%c0, %c0_1] : memref<16x32xf32, #tpu.memory_space<vmem>>, vector<16x32xf32>
    %c0_2 = arith.constant 0 : index
    %c0_3 = arith.constant 0 : index
    %4 = vector.load %arg4[%c0_2, %c0_3] : memref<16x1xi32, #tpu.memory_space<vmem>>, vector<16x1xi32>
    %cst = arith.constant dense<0xFF800000> : vector<16xf32>
    %5 = vector.multi_reduction <maximumf>, %3, %cst [1] : vector<16x32xf32> to vector<16xf32>
    %6 = vector.shape_cast %5 : vector<16xf32> to vector<16x1xf32>
    %7 = vector.broadcast %6 : vector<16x1xf32> to vector<16x32xf32>
    %8 = arith.subf %3, %7 : vector<16x32xf32>
    %9 = math.exp %8 : vector<16x32xf32>
    %cst_4 = arith.constant dense<0.000000e+00> : vector<16xf32>
    %10 = vector.multi_reduction <add>, %9, %cst_4 [1] : vector<16x32xf32> to vector<16xf32>
    %11 = vector.shape_cast %10 : vector<16xf32> to vector<16x1xf32>
    %12 = tpu.iota {dimensions = array<i32: 1>} : vector<16x32xi32>
    %13 = vector.broadcast %4 : vector<16x1xi32> to vector<16x32xi32>
    %14 = arith.cmpi eq, %12, %13 : vector<16x32xi32>
    %cst_5 = arith.constant 0.000000e+00 : f32
    %15 = vector.broadcast %cst_5 : f32 to vector<16x32xf32>
    %16 = arith.select %14, %8, %15 : vector<16x32xi1>, vector<16x32xf32>
    %cst_6 = arith.constant dense<0.000000e+00> : vector<16xf32>
    %17 = vector.multi_reduction <add>, %16, %cst_6 [1] : vector<16x32xf32> to vector<16xf32>
    %18 = vector.shape_cast %17 : vector<16xf32> to vector<16x1xf32>
    %19 = math.log %11 : vector<16x1xf32>
    %20 = arith.subf %18, %19 : vector<16x1xf32>
    %21 = math.exp %20 : vector<16x1xf32>
    %cst_7 = arith.constant 1.000000e+00 : f32
    %22 = vector.broadcast %cst_7 : f32 to vector<16x1xf32>
    %23 = arith.subf %21, %22 : vector<16x1xf32>
    %24 = arith.mulf %23, %23 : vector<16x1xf32>
    %cst_8 = arith.constant 0.000000e+00 : f32
    %25 = vector.broadcast %cst_8 : f32 to vector<16x1xf32>
    %26 = arith.subf %25, %24 : vector<16x1xf32>
    %cst_9 = arith.constant 2.000000e+02 : f32
    %27 = vector.broadcast %cst_9 : f32 to vector<16x1xf32>
    %28 = arith.mulf %26, %27 : vector<16x1xf32>
    %29 = math.exp %28 : vector<16x1xf32>
    %cst_10 = arith.constant 1.000000e+00 : f32
    %30 = vector.broadcast %cst_10 : f32 to vector<16x1xf32>
    %31 = arith.addf %30, %29 : vector<16x1xf32>
    %32 = arith.mulf %31, %20 : vector<16x1xf32>
    %cst_11 = arith.constant 0.000000e+00 : f32
    %33 = vector.broadcast %cst_11 : f32 to vector<16x1xf32>
    %34 = arith.subf %33, %32 : vector<16x1xf32>
    %c1_i32 = arith.constant 1 : i32
    %35 = arith.muli %arg0, %c1_i32 : i32
    %36 = arith.addi %35, %arg1 : i32
    %c16_i32 = arith.constant 16 : i32
    %37 = arith.muli %36, %c16_i32 : i32
    %38 = tpu.iota {dimensions = array<i32: 0>} : vector<16x1xi32>
    %39 = vector.broadcast %37 : i32 to vector<16x1xi32>
    %40 = arith.addi %39, %38 : vector<16x1xi32>
    %c0_12 = arith.constant 0 : index
    %41 = memref.load %arg2[%c0_12] : memref<1xi32, #tpu.memory_space<smem>>
    %42 = vector.broadcast %41 : i32 to vector<16x1xi32>
    %43 = arith.cmpi slt, %40, %42 : vector<16x1xi32>
    %cst_13 = arith.constant 0.000000e+00 : f32
    %44 = vector.broadcast %cst_13 : f32 to vector<16x1xf32>
    %45 = arith.select %43, %34, %44 : vector<16x1xi1>, vector<16x1xf32>
    %c0_14 = arith.constant 0 : index
    %c0_15 = arith.constant 0 : index
    %46 = vector.load %arg6[%c0_14, %c0_15] : memref<16x1xf32, #tpu.memory_space<vmem>>, vector<16x1xf32>
    %47 = arith.addf %46, %45 : vector<16x1xf32>
    %c0_16 = arith.constant 0 : index
    %c0_17 = arith.constant 0 : index
    %48 = vector.load %arg6[%c0_16, %c0_17] : memref<16x1xf32, #tpu.memory_space<vmem>>, vector<16x1xf32>
    tpu.vector_store %arg6[%c0_16, %c0_17], %47 {strides = array<i32>} : memref<16x1xf32, #tpu.memory_space<vmem>>, vector<16x1xf32>,
    %c0_i32_18 = arith.constant 0 : i32
    %49 = arith.cmpi eq, %arg1, %c0_i32_18 : i32
    %50 = arith.extui %49 : i1 to i32
    %c0_i32_19 = arith.constant 0 : i32
    %51 = arith.cmpi ne, %50, %c0_i32_19 : i32
    scf.if %51 {
      %c0_20 = arith.constant 0 : index
      %c0_21 = arith.constant 0 : index
      %52 = vector.load %arg6[%c0_20, %c0_21] : memref<16x1xf32, #tpu.memory_space<vmem>>, vector<16x1xf32>
      %53 = vector.shape_cast %52 : vector<16x1xf32> to vector<1x16x1xf32>
      %cst_22 = arith.constant dense<0.000000e+00> : vector<1xf32>
      %54 = vector.multi_reduction <add>, %53, %cst_22 [1, 2] : vector<1x16x1xf32> to vector<1xf32>
      %55 = vector.shape_cast %54 : vector<1xf32> to vector<1x1x1xf32>
      %56 = vector.extract %55[0, 0, 0] : f32 from vector<1x1x1xf32>
      %57 = vector.broadcast %56 : f32 to vector<1x8x128xf32>
      %c0_23 = arith.constant 0 : index
      %c0_24 = arith.constant 0 : index
      %c0_25 = arith.constant 0 : index
      %58 = vector.load %arg5[%c0_23, %c0_24, %c0_25] : memref<1x8x128xf32, #tpu.memory_space<vmem>>, vector<1x8x128xf32>
      tpu.vector_store %arg5[%c0_23, %c0_24, %c0_25], %57 {strides = array<i32>} : memref<1x8x128xf32, #tpu.memory_space<vmem>>, vector<1x8x128xf32>,
    } else {
    }
    return
  }
  func.func @transform_0(%arg0: i32, %arg1: i32, %arg2: memref<1xi32, #tpu.memory_space<smem>>) -> (i32, i32) {
    %c1_i32 = arith.constant 1 : i32
    %0 = arith.muli %arg0, %c1_i32 : i32
    %1 = arith.addi %0, %arg1 : i32
    %c0_i32 = arith.constant 0 : i32
    %c0_i32_0 = arith.constant 0 : i32
    return %1, %c0_i32 : i32, i32
  }
  func.func @transform_1(%arg0: i32, %arg1: i32, %arg2: memref<1xi32, #tpu.memory_space<smem>>) -> (i32, i32) {
    %c1_i32 = arith.constant 1 : i32
    %0 = arith.muli %arg0, %c1_i32 : i32
    %1 = arith.addi %0, %arg1 : i32
    %c0_i32 = arith.constant 0 : i32
    %c0_i32_0 = arith.constant 0 : i32
    return %1, %c0_i32 : i32, i32
  }
  func.func @transform_2(%arg0: i32, %arg1: i32, %arg2: memref<1xi32, #tpu.memory_space<smem>>) -> (i32, i32, i32) {
    %c0_i32 = arith.constant 0 : i32
    %c0_i32_0 = arith.constant 0 : i32
    %c0_i32_1 = arith.constant 0 : i32
    return %arg0, %c0_i32, %c0_i32_0 : i32, i32, i32
  }
}

</mosaic_0001>

<llo_original>
// kernel: lossfun_pallas.1
$region0: #{lossfun_pallas.1}
  #allocation0 [shape = 'u32[]', space=smem, size = 0x4, offset = 0x4, fixed_abs, tag = 'smem constant byte address 0x4 - core index']
  #allocation1 [shape = 'u32[72,128]{1,0:T(1,128)}', space=vmem, size = 0x9000, scoped, tag = 'internal scratch']
  #allocation2 [shape = 'f32[16,1]{1,0:T(8,128)}', space=vmem, size = 0x2000, scoped, tag = 'scratch operand']
  #allocation3 [shape = 's32[1]{0}', space=sflag, size = 0x4, scoped, tag = 'scoped memory for lossfun_pallas.1']
  #allocation4 [shape = 's32[1]{0:T(128)S(6)}', space=smem, size = 0x200, scoped, tag = 'prefetched SMEM operand 0']
  %s0 = inlined_call_operand.<no memory space> [shape: s32[1], index: 0, kind: input, shape index: {}]
  %s1 = inlined_call_operand.vmem [shape: f32[32,32], index: 1, kind: input, shape index: {}]
  %s2 = inlined_call_operand.vmem [shape: s32[32,1], index: 2, kind: input, shape index: {}]
  %s3 = inlined_call_operand.vmem [shape: f32[2,8,128], index: 3, kind: output, shape index: {}]
  %s4 = sld [smem:[#allocation0]]
  $region49: #{lossfun_pallas.1} parent=0
    _
  %s6 = ssub.s32 1, %s4
  %s7 = scalar_select 0, %s6, %s4
  %8 = sst [smem:[#allocation4]] %s0
  loop: start=0, step=1, limit=4
  $region2: #{lossfun_pallas.1} parent=0 // loop_pre_header
    _
  $region3: #{lossfun_pallas.1} parent=0 // loop_header
    %s10 = sphi 0, %s14
    %p11 = scmp.ge.s32.totalorder %s10, 4
    %s17 = sphi 0, %s29
    %s18 = sphi 0, %s25
    %s19 = sphi 0, %s17
    %s20 = sphi 0, %s18
    %s21 = sphi 0, %s19
    %s22 = sphi 0, %s20
    %s34 = sphi 0, %s36
    %s37 = sphi 0, %s34
    %s38 = sphi 0, %s37
    %s54 = sphi 0, %s38
    %s62 = sphi 0, %s64
    %s65 = sphi 0, %s62
    %s66 = sphi 0, %s65
    %s82 = sphi 0, %s66
    %s88 = sphi 0, %s90
    %s91 = sphi 0, %s88
    %s92 = sphi 0, %s91
    %s108 = sphi 0, %s92
  $region4: #{lossfun_pallas.1} parent=0 // loop_header_branch
    %13 = sbr.rel (%p11) target = $region8
  $region5: #{lossfun_pallas.1} parent=0 // loop_body
    %s15 = ssub.s32 %s10, 1
    %s16 = ssub.s32 %s10, 2
    %s23 = sadd.s32 1, %s18
    %p24 = scmp.ge.s32.totalorder %s23, 1
    %s25 = scalar_select %p24, 0, %s23
    %s26 = sadd.s32 1, %s17
    %s27 = scalar_select %p24, %s26, %s17
    %p28 = scmp.ge.s32.totalorder %s27, 2
    %s29 = scalar_select %p28, 0, %s27
    %s30 = sadd.s32 %s17, %s18
    %s31 = sadd.s32 %s29, %s25
    %s32 = ssub.s32 %s30, %s31
    %p33 = scmp.eq.s32.totalorder %s32, 0
    %s35 = sadd.s32 %s34, 1
    %s36 = scalar_select %p33, %s34, %s35
    %p39 = pneg %p33
    %p40 = scmp.eq.s32.totalorder %s10, 1
    %p41 = por %p39, %p40
    %p42 = scmp.ne.s32.totalorder %s34, %s37
    %p43 = scmp.eq.s32.totalorder %s10, 0
    %p44 = por %p42, %p43
    %p45 = scmp.ne.s32.totalorder %s34, %s37
    %p46 = scmp.eq.s32.totalorder %s15, 1
    %p47 = por %p45, %p46
    %p48 = scmp.ne.s32.totalorder %s37, %s38
    %p49 = scmp.eq.s32.totalorder %s15, 0
    %p50 = por %p48, %p49
    %p51 = scmp.ne.s32.totalorder %s37, %s38
    %p52 = scmp.eq.s32.totalorder %s16, 1
    %p53 = por %p51, %p52
    %p55 = scmp.ne.s32.totalorder %s38, %s54
    %p56 = scmp.eq.s32.totalorder %s16, 0
    %p57 = por %p55, %p56
    %s58 = sadd.s32 %s17, %s18
    %s59 = sadd.s32 %s29, %s25
    %s60 = ssub.s32 %s58, %s59
    %p61 = scmp.eq.s32.totalorder %s60, 0
    %s63 = sadd.s32 %s62, 1
    %s64 = scalar_select %p61, %s62, %s63
    %p67 = pneg %p61
    %p68 = scmp.eq.s32.totalorder %s10, 1
    %p69 = por %p67, %p68
    %p70 = scmp.ne.s32.totalorder %s62, %s65
    %p71 = scmp.eq.s32.totalorder %s10, 0
    %p72 = por %p70, %p71
    %p73 = scmp.ne.s32.totalorder %s62, %s65
    %p74 = scmp.eq.s32.totalorder %s15, 1
    %p75 = por %p73, %p74
    %p76 = scmp.ne.s32.totalorder %s65, %s66
    %p77 = scmp.eq.s32.totalorder %s15, 0
    %p78 = por %p76, %p77
    %p79 = scmp.ne.s32.totalorder %s65, %s66
    %p80 = scmp.eq.s32.totalorder %s16, 1
    %p81 = por %p79, %p80
    %p83 = scmp.ne.s32.totalorder %s66, %s82
    %p84 = scmp.eq.s32.totalorder %s16, 0
    %p85 = por %p83, %p84
    %s86 = ssub.s32 %s17, %s29
    %p87 = scmp.eq.s32.totalorder %s86, 0
    %s89 = sadd.s32 %s88, 1
    %s90 = scalar_select %p87, %s88, %s89
    %p93 = pneg %p87
    %p94 = scmp.eq.s32.totalorder %s10, 1
    %p95 = por %p93, %p94
    %p96 = scmp.ne.s32.totalorder %s88, %s91
    %p97 = scmp.eq.s32.totalorder %s10, 0
    %p98 = por %p96, %p97
    %p99 = scmp.ne.s32.totalorder %s88, %s91
    %p100 = scmp.eq.s32.totalorder %s15, 1
    %p101 = por %p99, %p100
    %p102 = scmp.ne.s32.totalorder %s91, %s92
    %p103 = scmp.eq.s32.totalorder %s15, 0
    %p104 = por %p102, %p103
    %p105 = scmp.ne.s32.totalorder %s91, %s92
    %p106 = scmp.eq.s32.totalorder %s16, 1
    %p107 = por %p105, %p106
    %p109 = scmp.ne.s32.totalorder %s92, %s108
    %p110 = scmp.eq.s32.totalorder %s16, 0
    %p111 = por %p109, %p110
    %p112 = scmp.le.s32.totalorder 1, %s10
    %p113 = scmp.lt.s32.totalorder %s10, 3
    %p114 = pnand %p112, %p113
    %p115 = pneg %p114
    // Predicated region
    $region9: #{lossfun_pallas.1} parent=5 // pred_check
      _
    $region10: #{lossfun_pallas.1} parent=5 // pred_check_branch
      %117 = sbr.rel (%p114) target = $region12
    $region11: #{lossfun_pallas.1} parent=5 // pred_region
      %s118 = ssub.s32 %s10, 1
    $region12: #{lossfun_pallas.1} parent=5 // pred_fallthru
      _
    %p119 = scmp.lt.s32.totalorder %s10, 2
    // Predicated region
    $region13: #{lossfun_pallas.1} parent=5 // pred_check
      %p120 = pneg %p119
    $region14: #{lossfun_pallas.1} parent=5 // pred_check_branch
      %122 = sbr.rel (%p120) target = $region16
    $region15: #{lossfun_pallas.1} parent=5 // pred_region
      // Predicated region
      $region17: #{lossfun_pallas.1} parent=15 // pred_check
        %p123 = pneg %p44
      $region18: #{lossfun_pallas.1} parent=15 // pred_check_branch
        %125 = sbr.rel (%p123) target = $region20
      $region19: #{lossfun_pallas.1} parent=15 // pred_region
        %s126 = sadd.s32 %s17, %s18
        %s127 = smul.u32 2, %s126
        %p128 = scmp.lt.s32.totalorder %s127, 3
        %s129 = scalar_select %p128, %s127, 3
        %s130 = smul.addr %s129, 8
        %s131 = scalar_lea.vmem %s1, %s130
        %s132 = sadd.s32 %s17, %s18
        %s133 = smul.u32 2, %s132
      $region20: #{lossfun_pallas.1} parent=15 // pred_fallthru
        _
      // Predicated region
      $region21: #{lossfun_pallas.1} parent=15 // pred_check
        %p134 = pneg %p72
      $region22: #{lossfun_pallas.1} parent=15 // pred_check_branch
        %136 = sbr.rel (%p134) target = $region24
      $region23: #{lossfun_pallas.1} parent=15 // pred_region
        %s137 = sadd.s32 %s17, %s18
        %s138 = smul.u32 2, %s137
        %p139 = scmp.lt.s32.totalorder %s138, 3
        %s140 = scalar_select %p139, %s138, 3
        %s141 = smul.addr %s140, 8
        %s142 = scalar_lea.vmem %s2, %s141
        %s143 = sadd.s32 %s17, %s18
        %s144 = smul.u32 2, %s143
      $region24: #{lossfun_pallas.1} parent=15 // pred_fallthru
        _
    $region16: #{lossfun_pallas.1} parent=5 // pred_fallthru
      _
    %p145 = scmp.le.s32.totalorder 1, %s10
    %p146 = scmp.lt.s32.totalorder %s10, 3
    %p147 = pnand %p145, %p146
    %p148 = pneg %p147
    // Predicated region
    $region25: #{lossfun_pallas.1} parent=5 // pred_check
      _
    $region26: #{lossfun_pallas.1} parent=5 // pred_check_branch
      %150 = sbr.rel (%p147) target = $region28
    $region27: #{lossfun_pallas.1} parent=5 // pred_region
      %s151 = ssub.s32 %s10, 1
      %s152 = sadd.s32 %s19, %s20
      %s153 = smul.u32 2, %s152
      %p154 = scmp.lt.s32.totalorder %s153, 3
      %s155 = scalar_select %p154, %s153, 3
      %s156 = smul.addr %s155, 8
      %s157 = scalar_lea.vmem %s1, %s156
      %p158 = pneg %p50
      %p159 = pneg %p47
      %s160 = sadd.s32 %s19, %s20
      %s161 = smul.u32 2, %s160
      %p162 = scmp.lt.s32.totalorder %s161, 3
      %s163 = scalar_select %p162, %s161, 3
      %s164 = smul.addr %s163, 8
      %s165 = scalar_lea.vmem %s2, %s164
      %p166 = pneg %p78
      %p167 = pneg %p75
      %p168 = pneg %p104
      %p169 = pneg %p101
      %p170 = scmp.lt.s32.totalorder %s19, 1
      %s171 = scalar_select %p170, %s19, 1
      %s172 = smul.addr %s171, 8
      %s173 = scalar_lea.vmem %s3, %s172
      %s174 = sadd.s32 %s19, %s20
      %s175 = smul.u32 2, %s174
      %p176 = scmp.lt.s32.totalorder %s175, 3
      %s177 = scalar_select %p176, %s175, 3
      %s178 = smul.addr %s177, 8
      %s179 = scalar_lea.vmem %s1, %s178
      %s180 = sadd.s32 %s19, %s20
      %s181 = smul.u32 2, %s180
      %s182 = sadd.s32 %s19, %s20
      %s183 = smul.u32 2, %s182
      %p184 = scmp.lt.s32.totalorder %s183, 3
      %s185 = scalar_select %p184, %s183, 3
      %s186 = smul.addr %s185, 8
      %s187 = scalar_lea.vmem %s2, %s186
      %s188 = sadd.s32 %s19, %s20
      %s189 = smul.u32 2, %s188
      %p190 = scmp.lt.s32.totalorder %s19, 1
      %s191 = scalar_select %p190, %s19, 1
      %s192 = smul.addr %s191, 8
      %s193 = scalar_lea.vmem %s3, %s192
      %p194 = scmp.eq.s32.totalorder %s20, 0
      // Predicated region
      $region29: #{lossfun_pallas.1} parent=27 // pred_check
        %p195 = pneg %p194
      $region30: #{lossfun_pallas.1} parent=27 // pred_check_branch
        %197 = sbr.rel (%p195) target = $region32
      $region31: #{lossfun_pallas.1} parent=27 // pred_region
        %vm198 = vcmask 7168
        %199 = vst.msk [vmem:[#allocation2] sm:$0xff] %vm198, 0.0
        %200 = vst.msk [vmem:[#allocation2 + $0x8] sm:$0xff] %vm198, 0.0
      $region32: #{lossfun_pallas.1} parent=27 // pred_fallthru
        _
      %v201 = vld [vmem:[%s179] sm:$0xff]
      %v202 = vld [vmem:[%s179 + $0x8] sm:$0xff]
      %v203 = vld [vmem:[%s187] sm:$0xff]
      %v204 = vld [vmem:[%s187 + $0x8] sm:$0xff]
      %vm205 = vcmask 261120
      %v206 = vsel %vm205, %v201, -inf
      %207 = vmax.xlane.f32.xlu0 %v206
      %v208 = vpop.xlane.xlu0 %207
      %v209 = vsel %vm205, %v202, -inf
      %210 = vmax.xlane.f32.xlu0 %v209
      %v211 = vpop.xlane.xlu0 %210
      %v212 = vsub.f32 %v201, %v208
      %v213 = vsub.f32 %v202, %v211
      %v214 = vmul.f32 %v212, 1.442695
      %v215 = vpow.pop %v214
      %v216 = vmul.f32 %v213, 1.442695
      %v217 = vpow.pop %v216
      %v218 = vsel %vm205, %v215, 0.0
      %219 = vadd.xlane.f32.xlu0 %v218
      %v220 = vpop.xlane.xlu0 %219
      %v221 = vsel %vm205, %v217, 0.0
      %222 = vadd.xlane.f32.xlu0 %v221
      %v223 = vpop.xlane.xlu0 %222
      %v224 = vlaneseq
      %v225 = vand.u32 %v224, 127
      %226 = vset.pattern.permute.xlu0 0
      %227 = vperm.xlu0 %226, %v203
      %v228 = vpop.permute.xlu0 %227
      %229 = vset.pattern.permute.xlu0 0
      %230 = vperm.xlu0 %229, %v204
      %v231 = vpop.permute.xlu0 %230
      %vm232 = vcmp.eq.s32.totalorder %v225, %v228
      %vm233 = vcmp.eq.s32.totalorder %v225, %v231
      %v234 = vsel %vm232, %v212, 0.0
      %v235 = vsel %vm233, %v213, 0.0
      %v236 = vsel %vm205, %v234, 0.0
      %237 = vadd.xlane.f32.xlu0 %v236
      %v238 = vpop.xlane.xlu0 %237
      %v239 = vsel %vm205, %v235, 0.0
      %240 = vadd.xlane.f32.xlu0 %v239
      %v241 = vpop.xlane.xlu0 %240
      %v242 = vlog2.pop %v220
      %v243 = vmul.f32 %v242, 0.6931472
      %v244 = vlog2.pop %v223
      %v245 = vmul.f32 %v244, 0.6931472
      %v246 = vsub.f32 %v238, %v243
      %v247 = vsub.f32 %v241, %v245
      %v248 = vmul.f32 %v246, 1.442695
      %v249 = vpow.pop %v248
      %v250 = vmul.f32 %v247, 1.442695
      %v251 = vpow.pop %v250
      %v252 = vsub.f32 %v249, 1.0
      %v253 = vsub.f32 %v251, 1.0
      %v254 = vmul.f32 %v252, %v252
      %v255 = vmul.f32 %v253, %v253
      %v256 = vsub.f32 0.0, %v254
      %v257 = vsub.f32 0.0, %v255
      %v258 = vmul.f32 %v256, 200.0
      %v259 = vmul.f32 %v257, 200.0
      %v260 = vmul.f32 %v258, 1.442695
      %v261 = vpow.pop %v260
      %v262 = vmul.f32 %v259, 1.442695
      %v263 = vpow.pop %v262
      %v264 = vadd.f32 %v261, 1.0
      %v265 = vadd.f32 %v263, 1.0
      %v266 = vmul.f32 %v264, %v246
      %v267 = vmul.f32 %v265, %v247
      %v268 = vsub.f32 0.0, %v266
      %v269 = vsub.f32 0.0, %v267
      %s270 = sadd.s32 %s19, %s20
      %s271 = smul.u32 %s270, 16
      %v272 = vlaneseq
      %v273 = vshrl.u32 %v272, 7
      %v274 = vadd.s32 %v273, 8
      %v275 = vstv %s271
      %v276 = vadd.s32 %v275, %v273
      %v277 = vadd.s32 %v275, %v274
      %s278 = sld [smem:[#allocation4]]
      %v279 = vstv %s278
      %vm280 = vcmp.lt.s32.totalorder %v276, %v279
      %vm281 = vcmp.lt.s32.totalorder %v277, %v279
      %v282 = vsel %vm280, %v268, 0.0
      %v283 = vsel %vm281, %v269, 0.0
      %v284 = vld [vmem:[#allocation2] sm:$0xff]
      %v285 = vld [vmem:[#allocation2 + $0x8] sm:$0xff]
      %v286 = vadd.f32 %v284, %v282
      %v287 = vadd.f32 %v285, %v283
      %vm288 = vcmask 7168
      %289 = vst.msk [vmem:[#allocation2] sm:$0xff] %vm288, %v286
      %290 = vst.msk [vmem:[#allocation2 + $0x8] sm:$0xff] %vm288, %v287
      // Predicated region
      $region33: #{lossfun_pallas.1} parent=27 // pred_check
        %p291 = pneg %p194
      $region34: #{lossfun_pallas.1} parent=27 // pred_check_branch
        %293 = sbr.rel (%p291) target = $region36
      $region35: #{lossfun_pallas.1} parent=27 // pred_region
        %v294 = vld [vmem:[#allocation2] sm:$0xff]
        %v295 = vld [vmem:[#allocation2 + $0x8] sm:$0xff]
        %v296 = vsel %vm288, %v294, 0.0
        %v297 = vsel %vm288, %v295, 0.0
        %v298 = vadd.f32 %v296, %v297
        %299 = vadd.xlane.f32.xlu0 %v298
        %v300 = vpop.xlane.xlu0 %299
        %v301 = vrot.slane %v300, 4
        %v302 = vadd.f32 %v300, %v301
        %v303 = vrot.slane %v302, 2
        %v304 = vadd.f32 %v302, %v303
        %v305 = vrot.slane %v304, 1
        %v306 = vadd.f32 %v304, %v305
        %s307 = vtos %v306
        %v308 = vstv %s307
        %309 = vst [vmem:[%s193] sm:$0xff] %v308
      $region36: #{lossfun_pallas.1} parent=27 // pred_fallthru
        _
      %p310 = scmp.lt.s32.totalorder %s19, 1
      %s311 = scalar_select %p310, %s19, 1
      %s312 = smul.addr %s311, 8
      %s313 = scalar_lea.vmem %s3, %s312
      // Predicated region
      $region37: #{lossfun_pallas.1} parent=27 // pred_check
        %p314 = pneg %p101
      $region38: #{lossfun_pallas.1} parent=27 // pred_check_branch
        %316 = sbr.rel (%p314) target = $region40
      $region39: #{lossfun_pallas.1} parent=27 // pred_region
        _
      $region40: #{lossfun_pallas.1} parent=27 // pred_fallthru
        _
    $region28: #{lossfun_pallas.1} parent=5 // pred_fallthru
      _
    %p317 = scmp.le.s32.totalorder 2, %s10
    // Predicated region
    $region41: #{lossfun_pallas.1} parent=5 // pred_check
      %p318 = pneg %p317
    $region42: #{lossfun_pallas.1} parent=5 // pred_check_branch
      %320 = sbr.rel (%p318) target = $region44
    $region43: #{lossfun_pallas.1} parent=5 // pred_region
      %s321 = ssub.s32 %s10, 2
      // Predicated region
      $region45: #{lossfun_pallas.1} parent=43 // pred_check
        %p322 = pneg %p107
      $region46: #{lossfun_pallas.1} parent=43 // pred_check_branch
        %324 = sbr.rel (%p322) target = $region48
      $region47: #{lossfun_pallas.1} parent=43 // pred_region
        %p325 = scmp.lt.s32.totalorder %s21, 1
        %s326 = scalar_select %p325, %s21, 1
        %s327 = smul.addr %s326, 8
        %s328 = scalar_lea.vmem %s3, %s327
      $region48: #{lossfun_pallas.1} parent=43 // pred_fallthru
        _
    $region44: #{lossfun_pallas.1} parent=5 // pred_fallthru
      _
  $region6: #{lossfun_pallas.1} parent=0 // loop_footer
    %s14 = sadd.s32 1, %s10
  $region7: #{lossfun_pallas.1} parent=0 // loop_footer_branch
    %9 = sbr.rel target = $region3
  $region8: #{lossfun_pallas.1} parent=0 // loop_exit
    _

</llo_original>
